<compile_context>
chip_gen: v7x
topology: tpu7x:2x2x1
jax: 0.10.0
libtpu: 0.0.40
codegen_flags: <defaults>
</compile_context>

<pallas_src>
import functools

import jax
import jax.numpy as jnp
from jax.experimental import pallas as pl
from jax.experimental.pallas import tpu as pltpu


def _round_up(n, m):
    return ((n + m - 1) // m) * m


def _cdiv(a, b):
    return -(-a // b)


def _pad_axis(a, axis, target):
    pad = target - a.shape[axis]
    if pad == 0:
        return a
    widths = [(0, 0)] * a.ndim
    widths[axis] = (0, pad)
    return jnp.pad(a, widths)


def _vmem_capacity_bytes():
    try:
        return int(pltpu.get_tpu_info().vmem_capacity_bytes)
    except Exception:
        return 64 << 20  # conservative: v7x per-TensorCore VMEM


# ---------------------------------------------------------------------------
# Kernels
# ---------------------------------------------------------------------------
def _ffn_kernel_resident(x_ref, w1_ref, b1_ref, w2_ref, b2_ref, o_ref):
    """Single-pass kernel: the whole (padded) W1/W2 stay VMEM-resident."""
    h = jnp.dot(x_ref[...], w1_ref[...], preferred_element_type=jnp.float32)
    h = jnp.maximum(h + b1_ref[...].astype(jnp.float32), 0.0)
    y = jnp.dot(h.astype(w2_ref.dtype), w2_ref[...],
                preferred_element_type=jnp.float32)
    o_ref[...] = (y + b2_ref[...].astype(jnp.float32)).astype(o_ref.dtype)


def _ffn_kernel_acc(x_ref, w1_ref, b1_ref, w2_ref, b2_ref, o_ref, acc_ref):
    """Accumulating kernel: d_ff (reduction of the 2nd matmul) is tiled."""
    k = pl.program_id(1)

    @pl.when(k == 0)
    def _():
        # Fold b2 into the accumulator init (saves a zero-fill + a VPU add).
        acc_ref[...] = jnp.broadcast_to(
            b2_ref[...].astype(jnp.float32), acc_ref.shape)

    # First matmul: full d_model contraction restricted to this d_ff tile.
    h = jnp.dot(x_ref[...], w1_ref[...], preferred_element_type=jnp.float32)
    h = jnp.maximum(h + b1_ref[...].astype(jnp.float32), 0.0)

    # Second matmul: partial contraction over this d_ff tile, f32 accumulate.
    acc_ref[...] += jnp.dot(h.astype(w2_ref.dtype), w2_ref[...],
                            preferred_element_type=jnp.float32)

    @pl.when(k == pl.num_programs(1) - 1)
    def _():
        o_ref[...] = acc_ref[...].astype(o_ref.dtype)


# ---------------------------------------------------------------------------
# Wrapper
# ---------------------------------------------------------------------------
@functools.partial(jax.jit, static_argnames=("tm", "tf", "compute_dtype"))
def feed_forward(x, w1, b1, w2, b2, *, tm=None, tf=None, compute_dtype=None):
    """x: [B, S, d_model] -> [B, S, d_model].

    tm: row tile over B*S (auto-derived if None).
    tf: d_ff tile (auto if None; specifying it forces the accumulating path).
    compute_dtype: matmul dtype.  None -> bf16 when x is f32 (MXU-native),
                   otherwise x.dtype.  Accumulation is always f32.
    """
    orig_dtype = x.dtype
    B, S, d_model = x.shape
    d_ff = w1.shape[1]
    M = B * S

    # ---- compute dtype (bf16 by default for f32 inputs) ---------------------
    if compute_dtype is None:
        cdt = jnp.dtype(jnp.bfloat16) if orig_dtype == jnp.float32 \
            else jnp.dtype(orig_dtype)
    else:
        cdt = jnp.dtype(compute_dtype)
    if x.dtype != cdt:
        x = x.astype(cdt)
    if w1.dtype != cdt:
        w1 = w1.astype(cdt)
    if w2.dtype != cdt:
        w2 = w2.astype(cdt)

    itc = cdt.itemsize                      # compute dtype bytes
    ito = jnp.dtype(orig_dtype).itemsize    # output dtype bytes
    itb = jnp.dtype(b1.dtype).itemsize      # bias dtype bytes

    # ---- hardware-aligned extents -------------------------------------------
    row_align = 16 if itc < 4 else 8        # bf16 packs 2 rows per sublane
    m_aligned = _round_up(M, row_align)
    dm_pad = _round_up(d_model, 128)        # lane-dense output stores
    f_pad0 = _round_up(d_ff, 128)

    vmem_cap = _vmem_capacity_bytes()
    budget = int(0.85 * vmem_cap)

    def vmem_needed(tm_, tf_, resident):
        x_tile = itc * tm_ * dm_pad
        w1_tile = itc * dm_pad * tf_
        w2_tile = itc * tf_ * dm_pad
        b_tiles = itb * 8 * (tf_ + dm_pad)      # biases pad to 8 sublanes
        o_tile = ito * tm_ * dm_pad
        h_bytes = (4 + itc) * tm_ * tf_         # f32 h + cast copy for dot #2
        acc = 0 if resident else 4 * tm_ * dm_pad
        return (2 * (x_tile + w1_tile + w2_tile + b_tiles + o_tile)
                + acc + h_bytes)

    tm_target = 512 if tm is None else tm
    tm_target = max(row_align, _round_up(min(tm_target, m_aligned), row_align))
    tm_floor = min(m_aligned, 128)          # keep MXU LHS tiles reasonably tall

    # ---- path & tile selection ----------------------------------------------
    use_resident = (tf is None) and vmem_needed(tm_floor, f_pad0, True) <= budget

    if use_resident:
        tf_eff, f_pad = f_pad0, f_pad0
        tm_eff = tm_target
        while tm_eff > tm_floor and vmem_needed(tm_eff, tf_eff, True) > budget:
            tm_eff = max(tm_floor, _round_up(tm_eff // 2, row_align))
        # Keep >= 2 M tiles when rows permit so v7x's two TensorCores both get
        # work; costs nothing here because weights are not re-streamed.
        if tm_eff >= m_aligned and m_aligned >= 2 * row_align:
            tm_eff = _round_up(_cdiv(m_aligned, 2), row_align)
    else:
        tf_eff = min(2048, f_pad0) if tf is None else min(tf, f_pad0)
        tf_eff = max(128, (tf_eff // 128) * 128)
        tm_eff = tm_target
        # Shrink tf first (does not change HBM weight traffic), then tm.
        while vmem_needed(tm_eff, tf_eff, False) > budget:
            if tf_eff > 512:
                tf_eff //= 2
            elif tm_eff > 128:
                tm_eff = max(128, _round_up(tm_eff // 2, row_align))
            elif tf_eff > 128:
                tf_eff //= 2
            elif tm_eff > row_align:
                tm_eff = max(row_align, _round_up(tm_eff // 2, row_align))
            else:
                break
        f_pad = _round_up(f_pad0, tf_eff)

    m_pad = _round_up(m_aligned, tm_eff)
    n_m = m_pad // tm_eff
    n_f = f_pad // tf_eff

    # ---- padded operands (no-op when already aligned) ------------------------
    x2d = _pad_axis(_pad_axis(x.reshape(M, d_model), 1, dm_pad), 0, m_pad)
    w1p = _pad_axis(_pad_axis(w1, 0, dm_pad), 1, f_pad)
    b1p = _pad_axis(b1.reshape(1, d_ff), 1, f_pad)
    w2p = _pad_axis(_pad_axis(w2, 0, f_pad), 1, dm_pad)
    b2p = _pad_axis(b2.reshape(1, d_model), 1, dm_pad)

    # ---- VMEM limit (chip-aware cap) -----------------------------------------
    vneed = vmem_needed(tm_eff, tf_eff, use_resident)
    vmem_limit = int(min(max(vneed + vneed // 3, 32 << 20),
                         int(0.9 * vmem_cap)))
    vmem_limit = max(vmem_limit, vneed)

    # ---- cost estimate with actual traffic -----------------------------------
    weight_passes = 1 if use_resident else n_m
    cost = pl.CostEstimate(
        flops=4 * M * d_model * d_ff,
        transcendentals=0,
        bytes_accessed=int(itc * x2d.size + ito * m_pad * dm_pad
                           + weight_passes * itc * (w1p.size + w2p.size)
                           + weight_passes * itb * (b1p.size + b2p.size)))

    if use_resident:
        grid = (n_m,)
        in_specs = [
            pl.BlockSpec((tm_eff, dm_pad), lambda i: (i, 0)),   # x
            pl.BlockSpec((dm_pad, f_pad), lambda i: (0, 0)),    # W1 (resident)
            pl.BlockSpec((1, f_pad), lambda i: (0, 0)),         # b1 (resident)
            pl.BlockSpec((f_pad, dm_pad), lambda i: (0, 0)),    # W2 (resident)
            pl.BlockSpec((1, dm_pad), lambda i: (0, 0)),        # b2 (resident)
        ]
        out_spec = pl.BlockSpec((tm_eff, dm_pad), lambda i: (i, 0))
        scratch = []
        kernel = _ffn_kernel_resident
        dims = ("parallel",)
    else:
        grid = (n_m, n_f)
        in_specs = [
            pl.BlockSpec((tm_eff, dm_pad), lambda i, k: (i, 0)),   # x
            pl.BlockSpec((dm_pad, tf_eff), lambda i, k: (0, k)),   # W1
            pl.BlockSpec((1, tf_eff), lambda i, k: (0, k)),        # b1
            pl.BlockSpec((tf_eff, dm_pad), lambda i, k: (k, 0)),   # W2
            pl.BlockSpec((1, dm_pad), lambda i, k: (0, 0)),        # b2
        ]
        out_spec = pl.BlockSpec((tm_eff, dm_pad), lambda i, k: (i, 0))
        scratch = [pltpu.VMEM((tm_eff, dm_pad), jnp.float32)]
        kernel = _ffn_kernel_acc
        dims = ("parallel", "arbitrary")

    out2d = pl.pallas_call(
        kernel,
        out_shape=jax.ShapeDtypeStruct((m_pad, dm_pad), orig_dtype),
        grid_spec=pltpu.PrefetchScalarGridSpec(
            num_scalar_prefetch=0,
            grid=grid,
            in_specs=in_specs,
            out_specs=out_spec,
            scratch_shapes=scratch),
        compiler_params=pltpu.CompilerParams(
            dimension_semantics=dims,
            vmem_limit_bytes=vmem_limit),
        cost_estimate=cost,
    )(x2d, w1p, b1p, w2p, b2p)

    return out2d[:M, :d_model].reshape(B, S, d_model)


def _init_params(key, d_model, d_ff, dtype=jnp.float32):
    """Deterministic init mimicking nn.Linear's uniform(-1/sqrt(fan_in), +)."""
    k1, k2, k3, k4 = jax.random.split(key, 4)
    lim1 = 1.0 / jnp.sqrt(d_model)
    lim2 = 1.0 / jnp.sqrt(d_ff)
    w1 = jax.random.uniform(k1, (d_model, d_ff), dtype, -lim1, lim1)
    b1 = jax.random.uniform(k2, (d_ff,), dtype, -lim1, lim1)
    w2 = jax.random.uniform(k3, (d_ff, d_model), dtype, -lim2, lim2)
    b2 = jax.random.uniform(k4, (d_model,), dtype, -lim2, lim2)
    return w1, b1, w2, b2


if __name__ == "__main__":
    key = jax.random.PRNGKey(0)
    kx, kp = jax.random.split(key)

    B, S, d_model = 2, 8, 32
    d_ff = 4 * d_model  # default d_ff = 4 * d_model

    x = jax.random.normal(kx, (B, S, d_model), jnp.float32)
    w1, b1, w2, b2 = _init_params(kp, d_model, d_ff)

    # Pure-JAX reference.
    ref = jnp.maximum(x @ w1 + b1, 0.0) @ w2 + b2

    # Default path: bf16 MXU compute, f32 accumulation, weight-resident kernel.
    out = jax.block_until_ready(feed_forward(x, w1, b1, w2, b2))
    assert out.shape == (B, S, d_model)
    assert jnp.allclose(out, ref, atol=3e-2, rtol=3e-2)

    # Exact f32 path (bit-level semantics of the PyTorch module).
    out_f32 = jax.block_until_ready(
        feed_forward(x, w1, b1, w2, b2, compute_dtype=jnp.float32))
    assert jnp.allclose(out_f32, ref, atol=1e-5, rtol=1e-5)

    # Also exercise the accumulating (tiled d_ff) path.
    out_acc = jax.block_until_ready(feed_forward(x, w1, b1, w2, b2, tf=128))
    assert jnp.allclose(out_acc, ref, atol=3e-2, rtol=3e-2)

    print("KERNEL_OK")
</pallas_src>

<mosaic_0001>
module attributes {stable_mosaic.version = 11 : i64} {
  func.func @_ffn_kernel_resident(%arg0: i32, %arg1: memref<16x128xbf16, #tpu.memory_space<vmem>>, %arg2: memref<128x128xbf16, #tpu.memory_space<vmem>>, %arg3: memref<1x128xf32, #tpu.memory_space<vmem>>, %arg4: memref<128x128xbf16, #tpu.memory_space<vmem>>, %arg5: memref<1x128xf32, #tpu.memory_space<vmem>>, %arg6: memref<16x128xf32, #tpu.memory_space<vmem>>) attributes {dimension_semantics = [#tpu.dimension_semantics<parallel>], iteration_bounds = array<i64: 1>, scalar_prefetch = 0 : i64, scratch_operands = 0 : i64, tpu.core_type = #tpu.core_type<tc>, window_params = [{transform_indices = @transform_0, window_bounds = array<i64: 16, 128>}, {pipeline_mode = #tpu.pipeline_mode<synchronous>, transform_indices = @transform_1, window_bounds = array<i64: 128, 128>}, {pipeline_mode = #tpu.pipeline_mode<synchronous>, transform_indices = @transform_2, window_bounds = array<i64: 1, 128>}, {pipeline_mode = #tpu.pipeline_mode<synchronous>, transform_indices = @transform_3, window_bounds = array<i64: 128, 128>}, {pipeline_mode = #tpu.pipeline_mode<synchronous>, transform_indices = @transform_4, window_bounds = array<i64: 1, 128>}, {transform_indices = @transform_5, window_bounds = array<i64: 16, 128>}]} {
    %c0 = arith.constant 0 : index
    %c0_0 = arith.constant 0 : index
    %0 = vector.load %arg1[%c0, %c0_0] : memref<16x128xbf16, #tpu.memory_space<vmem>>, vector<16x128xbf16>
    %c0_1 = arith.constant 0 : index
    %c0_2 = arith.constant 0 : index
    %1 = vector.load %arg2[%c0_1, %c0_2] : memref<128x128xbf16, #tpu.memory_space<vmem>>, vector<128x128xbf16>
    %cst = arith.constant dense<0.000000e+00> : vector<16x128xf32>
    %2 = tpu.matmul %0, %1, %cst {dimension_numbers = #tpu.dot_dimension_numbers<[1], [0], [0], [1], [0, 0, 1, 1], [], []>} : vector<16x128xbf16>, vector<128x128xbf16>, vector<16x128xf32> -> vector<16x128xf32>
    %c0_3 = arith.constant 0 : index
    %c0_4 = arith.constant 0 : index
    %3 = vector.load %arg3[%c0_3, %c0_4] : memref<1x128xf32, #tpu.memory_space<vmem>>, vector<1x128xf32>
    %4 = vector.broadcast %3 : vector<1x128xf32> to vector<16x128xf32>
    %5 = arith.addf %2, %4 : vector<16x128xf32>
    %cst_5 = arith.constant 0.000000e+00 : f32
    %6 = vector.broadcast %cst_5 : f32 to vector<16x128xf32>
    %7 = arith.maximumf %5, %6 : vector<16x128xf32>
    %8 = arith.truncf %7 : vector<16x128xf32> to vector<16x128xbf16>
    %c0_6 = arith.constant 0 : index
    %c0_7 = arith.constant 0 : index
    %9 = vector.load %arg4[%c0_6, %c0_7] : memref<128x128xbf16, #tpu.memory_space<vmem>>, vector<128x128xbf16>
    %cst_8 = arith.constant dense<0.000000e+00> : vector<16x128xf32>
    %10 = tpu.matmul %8, %9, %cst_8 {dimension_numbers = #tpu.dot_dimension_numbers<[1], [0], [0], [1], [0, 0, 1, 1], [], []>} : vector<16x128xbf16>, vector<128x128xbf16>, vector<16x128xf32> -> vector<16x128xf32>
    %c0_9 = arith.constant 0 : index
    %c0_10 = arith.constant 0 : index
    %11 = vector.load %arg5[%c0_9, %c0_10] : memref<1x128xf32, #tpu.memory_space<vmem>>, vector<1x128xf32>
    %12 = vector.broadcast %11 : vector<1x128xf32> to vector<16x128xf32>
    %13 = arith.addf %10, %12 : vector<16x128xf32>
    %c0_11 = arith.constant 0 : index
    %c0_12 = arith.constant 0 : index
    %14 = vector.load %arg6[%c0_11, %c0_12] : memref<16x128xf32, #tpu.memory_space<vmem>>, vector<16x128xf32>
    tpu.vector_store %arg6[%c0_11, %c0_12], %13 {strides = array<i32>} : memref<16x128xf32, #tpu.memory_space<vmem>>, vector<16x128xf32>,
    return
  }
  func.func @transform_0(%arg0: i32) -> (i32, i32) {
    %c0_i32 = arith.constant 0 : i32
    %c0_i32_0 = arith.constant 0 : i32
    return %arg0, %c0_i32 : i32, i32
  }
  func.func @transform_1(%arg0: i32) -> (i32, i32) {
    %c0_i32 = arith.constant 0 : i32
    %c0_i32_0 = arith.constant 0 : i32
    %c0_i32_1 = arith.constant 0 : i32
    return %c0_i32, %c0_i32_0 : i32, i32
  }
  func.func @transform_2(%arg0: i32) -> (i32, i32) {
    %c0_i32 = arith.constant 0 : i32
    %c0_i32_0 = arith.constant 0 : i32
    %c0_i32_1 = arith.constant 0 : i32
    return %c0_i32, %c0_i32_0 : i32, i32
  }
  func.func @transform_3(%arg0: i32) -> (i32, i32) {
    %c0_i32 = arith.constant 0 : i32
    %c0_i32_0 = arith.constant 0 : i32
    %c0_i32_1 = arith.constant 0 : i32
    return %c0_i32, %c0_i32_0 : i32, i32
  }
  func.func @transform_4(%arg0: i32) -> (i32, i32) {
    %c0_i32 = arith.constant 0 : i32
    %c0_i32_0 = arith.constant 0 : i32
    %c0_i32_1 = arith.constant 0 : i32
    return %c0_i32, %c0_i32_0 : i32, i32
  }
  func.func @transform_5(%arg0: i32) -> (i32, i32) {
    %c0_i32 = arith.constant 0 : i32
    %c0_i32_0 = arith.constant 0 : i32
    return %arg0, %c0_i32 : i32, i32
  }
}

</mosaic_0001>

<llo_original>
// kernel: feed_forward.1
$region0: #{feed_forward.1}
  #allocation0 [shape = 'u32[]', space=smem, size = 0x4, offset = 0x4, fixed_abs, tag = 'smem constant byte address 0x4 - core index']
  #allocation1 [shape = 'u32[144,128]{1,0:T(1,128)}', space=vmem, size = 0x12000, scoped, tag = 'internal scratch']
  %s0 = inlined_call_operand.vmem [shape: bf16[16,128], index: 0, kind: input, shape index: {}]
  %s1 = inlined_call_operand.vmem [shape: bf16[128,128], index: 1, kind: input, shape index: {}]
  %s2 = inlined_call_operand.vmem [shape: f32[1,128], index: 2, kind: input, shape index: {}]
  %s3 = inlined_call_operand.vmem [shape: bf16[128,128], index: 3, kind: input, shape index: {}]
  %s4 = inlined_call_operand.vmem [shape: f32[1,128], index: 4, kind: input, shape index: {}]
  %s5 = inlined_call_operand.vmem [shape: f32[16,128], index: 5, kind: output, shape index: {}]
  %s6 = sld [smem:[#allocation0]]
  $region30: #{feed_forward.1} parent=0
    _
  %s8 = ssub.s32 1, %s6
  %s9 = scalar_select 0, %s8, %s6
  // Predicated region
  $region2: #{feed_forward.1} parent=0 // pred_check
    _
  $region3: #{feed_forward.1} parent=0 // pred_check_branch
    %11 = sbr.rel (0) target = $region5
  $region4: #{feed_forward.1} parent=0 // pred_region
    _
  $region5: #{feed_forward.1} parent=0 // pred_fallthru
    _
  // Predicated region
  $region6: #{feed_forward.1} parent=0 // pred_check
    _
  $region7: #{feed_forward.1} parent=0 // pred_check_branch
    %13 = sbr.rel (0) target = $region9
  $region8: #{feed_forward.1} parent=0 // pred_region
    _
  $region9: #{feed_forward.1} parent=0 // pred_fallthru
    _
  // Predicated region
  $region10: #{feed_forward.1} parent=0 // pred_check
    _
  $region11: #{feed_forward.1} parent=0 // pred_check_branch
    %15 = sbr.rel (0) target = $region13
  $region12: #{feed_forward.1} parent=0 // pred_region
    _
  $region13: #{feed_forward.1} parent=0 // pred_fallthru
    _
  // Predicated region
  $region14: #{feed_forward.1} parent=0 // pred_check
    _
  $region15: #{feed_forward.1} parent=0 // pred_check_branch
    %17 = sbr.rel (0) target = $region17
  $region16: #{feed_forward.1} parent=0 // pred_region
    _
  $region17: #{feed_forward.1} parent=0 // pred_fallthru
    _
  // Predicated region
  $region18: #{feed_forward.1} parent=0 // pred_check
    _
  $region19: #{feed_forward.1} parent=0 // pred_check_branch
    %19 = sbr.rel (0) target = $region21
  $region20: #{feed_forward.1} parent=0 // pred_region
    _
  $region21: #{feed_forward.1} parent=0 // pred_fallthru
    _
  %v21 = vld [vmem:[%s0] sm:$0xf]
  %v22 = vld [vmem:[%s0 + $0x4] sm:$0xf]
  %v23 = vld [vmem:[%s1] sm:$0xf]
  %v24 = vld [vmem:[%s1 + $0x4] sm:$0xf]
  %v25 = vld [vmem:[%s1 + $0x8] sm:$0xf]
  %v26 = vld [vmem:[%s1 + $0xc] sm:$0xf]
  %v27 = vld [vmem:[%s1 + $0x10] sm:$0xf]
  %v28 = vld [vmem:[%s1 + $0x14] sm:$0xf]
  %v29 = vld [vmem:[%s1 + $0x18] sm:$0xf]
  %v30 = vld [vmem:[%s1 + $0x1c] sm:$0xf]
  %v31 = vld [vmem:[%s1 + $0x20] sm:$0xf]
  %v32 = vld [vmem:[%s1 + $0x24] sm:$0xf]
  %v33 = vld [vmem:[%s1 + $0x28] sm:$0xf]
  %v34 = vld [vmem:[%s1 + $0x2c] sm:$0xf]
  %v35 = vld [vmem:[%s1 + $0x30] sm:$0xf]
  %v36 = vld [vmem:[%s1 + $0x34] sm:$0xf]
  %v37 = vld [vmem:[%s1 + $0x38] sm:$0xf]
  %v38 = vld [vmem:[%s1 + $0x3c] sm:$0xf]
  %v39 = vld [vmem:[%s2] sm:$0x1]
  %v41 = vlaneseq
  %v42 = vshrl.u32 %v41, 7
  %v43 = vsub.s32 0, %v42
  %v44 = vrot.slane %v39, %v43
  %v48 = vunpack.c.l.b16 %v21
  %v49 = vunpack.c.l.b16 %v22
  %v50 = vpack.c.b16 %v49, %v48
  %v68 = vunpack.c.l.b16 %v23
  %v69 = vunpack.c.l.b16 %v24
  %v70 = vunpack.c.l.b16 %v25
  %v71 = vunpack.c.l.b16 %v26
  %v72 = vunpack.c.l.b16 %v27
  %v73 = vunpack.c.l.b16 %v28
  %v74 = vunpack.c.l.b16 %v29
  %v75 = vunpack.c.l.b16 %v30
  %v76 = vunpack.c.l.b16 %v31
  %v77 = vunpack.c.l.b16 %v32
  %v78 = vunpack.c.l.b16 %v33
  %v79 = vunpack.c.l.b16 %v34
  %v80 = vunpack.c.l.b16 %v35
  %v81 = vunpack.c.l.b16 %v36
  %v82 = vunpack.c.l.b16 %v37
  %v83 = vunpack.c.l.b16 %v38
  %v84 = vpack.c.b16 %v69, %v68
  %v85 = vpack.c.b16 %v71, %v70
  %v86 = vpack.c.b16 %v73, %v72
  %v87 = vpack.c.b16 %v75, %v74
  %v88 = vpack.c.b16 %v77, %v76
  %v89 = vpack.c.b16 %v79, %v78
  %v90 = vpack.c.b16 %v81, %v80
  %v91 = vpack.c.b16 %v83, %v82
  %100 = vmatprep.subr.bf16.mxu0 0
  %101 = vmatpush1.bf16.msra.mxu0 %v84
  %102 = vmatprep.subr.bf16.mxu0 0
  %103 = vmatpush1.bf16.msra.mxu0 %v85
  %104 = vmatprep.subr.bf16.mxu0 0
  %105 = vmatpush1.bf16.msra.mxu0 %v86
  %106 = vmatprep.subr.bf16.mxu0 0
  %107 = vmatpush1.bf16.msra.mxu0 %v87
  %108 = vmatprep.subr.bf16.mxu0 0
  %109 = vmatpush1.bf16.msra.mxu0 %v88
  %110 = vmatprep.subr.bf16.mxu0 0
  %111 = vmatpush1.bf16.msra.mxu0 %v89
  %112 = vmatprep.subr.bf16.mxu0 0
  %113 = vmatpush1.bf16.msra.mxu0 %v90
  %114 = vmatprep.subr.bf16.mxu0 0
  %115 = vmatpush1.bf16.msra.mxu0 %v91
  %116 = vmatprep.subr.bf16.mxu0 0
  %117 = vmatpush1.bf16.msra.mxu0 0
  %118 = vmatprep.subr.bf16.mxu0 0
  %119 = vmatpush1.bf16.msra.mxu0 0
  %120 = vmatprep.subr.bf16.mxu0 0
  %121 = vmatpush1.bf16.msra.mxu0 0
  %122 = vmatprep.subr.bf16.mxu0 0
  %123 = vmatpush1.bf16.msra.mxu0 0
  %124 = vmatprep.subr.bf16.mxu0 0
  %125 = vmatpush1.bf16.msra.mxu0 0
  %126 = vmatprep.subr.bf16.mxu0 0
  %127 = vmatpush1.bf16.msra.mxu0 0
  %128 = vmatprep.subr.bf16.mxu0 0
  %129 = vmatpush1.bf16.msra.mxu0 0
  %130 = vmatprep.subr.bf16.mxu0 0
  %131 = vmatpush1.bf16.msra.mxu0 0
  %132 = vmatprep.mubr.bf16.mxu0 0
  %133 = vmatmul.mubr.bf16.gmra.mrb[0].mxu0 %v50
  %v134 = vpop.f32.mrb[0].mxu0
  %v135 = vadd.f32 %v44, %v134
  %v136 = vpop.f32.mrb[0].mxu0
  %v137 = vpop.f32.mrb[0].mxu0
  %v138 = vadd.f32 %v44, %v137
  %v139 = vpop.f32.mrb[0].mxu0
  %140 = vdwg.mxu0
  %v141 = vmax.f32 %v135, 0.0
  %v142 = vmax.f32 %v138, 0.0
  %v143 = vpack.c.bf16 %v142, %v141
  %v144 = vld [vmem:[%s3] sm:$0xf]
  %v145 = vld [vmem:[%s3 + $0x4] sm:$0xf]
  %v146 = vld [vmem:[%s3 + $0x8] sm:$0xf]
  %v147 = vld [vmem:[%s3 + $0xc] sm:$0xf]
  %v148 = vld [vmem:[%s3 + $0x10] sm:$0xf]
  %v149 = vld [vmem:[%s3 + $0x14] sm:$0xf]
  %v150 = vld [vmem:[%s3 + $0x18] sm:$0xf]
  %v151 = vld [vmem:[%s3 + $0x1c] sm:$0xf]
  %v152 = vld [vmem:[%s3 + $0x20] sm:$0xf]
  %v153 = vld [vmem:[%s3 + $0x24] sm:$0xf]
  %v154 = vld [vmem:[%s3 + $0x28] sm:$0xf]
  %v155 = vld [vmem:[%s3 + $0x2c] sm:$0xf]
  %v156 = vld [vmem:[%s3 + $0x30] sm:$0xf]
  %v157 = vld [vmem:[%s3 + $0x34] sm:$0xf]
  %v158 = vld [vmem:[%s3 + $0x38] sm:$0xf]
  %v159 = vld [vmem:[%s3 + $0x3c] sm:$0xf]
  %v160 = vld [vmem:[%s4] sm:$0x1]
  %v162 = vlaneseq
  %v163 = vshrl.u32 %v162, 7
  %v164 = vsub.s32 0, %v163
  %v165 = vrot.slane %v160, %v164
  %v183 = vunpack.c.l.b16 %v144
  %v184 = vunpack.c.l.b16 %v145
  %v185 = vunpack.c.l.b16 %v146
  %v186 = vunpack.c.l.b16 %v147
  %v187 = vunpack.c.l.b16 %v148
  %v188 = vunpack.c.l.b16 %v149
  %v189 = vunpack.c.l.b16 %v150
  %v190 = vunpack.c.l.b16 %v151
  %v191 = vunpack.c.l.b16 %v152
  %v192 = vunpack.c.l.b16 %v153
  %v193 = vunpack.c.l.b16 %v154
  %v194 = vunpack.c.l.b16 %v155
  %v195 = vunpack.c.l.b16 %v156
  %v196 = vunpack.c.l.b16 %v157
  %v197 = vunpack.c.l.b16 %v158
  %v198 = vunpack.c.l.b16 %v159
  %v199 = vpack.c.b16 %v184, %v183
  %v200 = vpack.c.b16 %v186, %v185
  %v201 = vpack.c.b16 %v188, %v187
  %v202 = vpack.c.b16 %v190, %v189
  %v203 = vpack.c.b16 %v192, %v191
  %v204 = vpack.c.b16 %v194, %v193
  %v205 = vpack.c.b16 %v196, %v195
  %v206 = vpack.c.b16 %v198, %v197
  %215 = vmatprep.subr.bf16.mxu0 0
  %216 = vmatpush1.bf16.msra.mxu0 %v199
  %217 = vmatprep.subr.bf16.mxu0 0
  %218 = vmatpush1.bf16.msra.mxu0 %v200
  %219 = vmatprep.subr.bf16.mxu0 0
  %220 = vmatpush1.bf16.msra.mxu0 %v201
  %221 = vmatprep.subr.bf16.mxu0 0
  %222 = vmatpush1.bf16.msra.mxu0 %v202
  %223 = vmatprep.subr.bf16.mxu0 0
  %224 = vmatpush1.bf16.msra.mxu0 %v203
  %225 = vmatprep.subr.bf16.mxu0 0
  %226 = vmatpush1.bf16.msra.mxu0 %v204
  %227 = vmatprep.subr.bf16.mxu0 0
  %228 = vmatpush1.bf16.msra.mxu0 %v205
  %229 = vmatprep.subr.bf16.mxu0 0
  %230 = vmatpush1.bf16.msra.mxu0 %v206
  %231 = vmatprep.subr.bf16.mxu0 0
  %232 = vmatpush1.bf16.msra.mxu0 0
  %233 = vmatprep.subr.bf16.mxu0 0
  %234 = vmatpush1.bf16.msra.mxu0 0
  %235 = vmatprep.subr.bf16.mxu0 0
  %236 = vmatpush1.bf16.msra.mxu0 0
  %237 = vmatprep.subr.bf16.mxu0 0
  %238 = vmatpush1.bf16.msra.mxu0 0
  %239 = vmatprep.subr.bf16.mxu0 0
  %240 = vmatpush1.bf16.msra.mxu0 0
  %241 = vmatprep.subr.bf16.mxu0 0
  %242 = vmatpush1.bf16.msra.mxu0 0
  %243 = vmatprep.subr.bf16.mxu0 0
  %244 = vmatpush1.bf16.msra.mxu0 0
  %245 = vmatprep.subr.bf16.mxu0 0
  %246 = vmatpush1.bf16.msra.mxu0 0
  %247 = vmatprep.mubr.bf16.mxu0 0
  %248 = vmatmul.mubr.bf16.gmra.mrb[0].mxu0 %v143
  %v249 = vpop.f32.mrb[0].mxu0
  %v250 = vadd.f32 %v165, %v249
  %v251 = vpop.f32.mrb[0].mxu0
  %v252 = vpop.f32.mrb[0].mxu0
  %v253 = vadd.f32 %v165, %v252
  %v254 = vpop.f32.mrb[0].mxu0
  %255 = vdwg.mxu0
  %256 = vst [vmem:[%s5] sm:$0xff] %v250
  %257 = vst [vmem:[%s5 + $0x8] sm:$0xff] %v253
  // Predicated region
  $region22: #{feed_forward.1} parent=0 // pred_check
    _
  $region23: #{feed_forward.1} parent=0 // pred_check_branch
    %259 = sbr.rel (0) target = $region25
  $region24: #{feed_forward.1} parent=0 // pred_region
    _
  $region25: #{feed_forward.1} parent=0 // pred_fallthru
    _
  // Predicated region
  $region26: #{feed_forward.1} parent=0 // pred_check
    _
  $region27: #{feed_forward.1} parent=0 // pred_check_branch
    %261 = sbr.rel (0) target = $region29
  $region28: #{feed_forward.1} parent=0 // pred_region
    _
  $region29: #{feed_forward.1} parent=0 // pred_fallthru
    _

</llo_original>
